<compile_context>
chip_gen: v7x
topology: tpu7x:2x2x1
jax: 0.10.0
libtpu: 0.0.40
codegen_flags: <defaults>
</compile_context>

<pallas_src>
import functools

import jax
import jax.numpy as jnp
from jax.experimental import pallas as pl
from jax.experimental.pallas import tpu as pltpu

D_X = 16 * 15 * 2      # 480 — x / output feature width
D_Z = 64 * 2           # 128 — z feature width
D_H = 128              # fc2 / fc11 hidden width
D_ZP = 128             # fc12 output (64) padded to 128 lanes (kept resident)


def _round_up(n, m):
    return (n + m - 1) // m * m


def adaptnet_kernel(x_ref, z_ref,
                    w11_ref, b11_ref,
                    w12_ref, b12_ref,
                    w2_ref, b2_ref,
                    w3h_ref, w3z_ref, b3_ref,
                    out_ref):
    x_f32 = x_ref[...]                                   # (tb, 480) f32 residual
    x_bf = x_f32.astype(jnp.bfloat16)
    z_bf = z_ref[...].astype(jnp.bfloat16)               # (tb, 128)

    # z = relu(fc11(z))                                  (tb, 128)
    z1 = jnp.dot(z_bf, w11_ref[...], preferred_element_type=jnp.float32)
    z1 = jnp.maximum(z1 + b11_ref[...], 0.0)

    # z = relu(fc12(z))                                  (tb, 128); lanes 64.. are 0
    z2 = jnp.dot(z1.astype(jnp.bfloat16), w12_ref[...],
                 preferred_element_type=jnp.float32)
    z2 = jnp.maximum(z2 + b12_ref[...], 0.0)

    # h = relu(fc2(x))                                   (tb, 128)
    h = jnp.dot(x_bf, w2_ref[...], preferred_element_type=jnp.float32)
    h = jnp.maximum(h + b2_ref[...], 0.0)

    # y = fc3(cat(h, z)) as two accumulating bf16 dots   (tb, 480)
    y = jnp.dot(h.astype(jnp.bfloat16), w3h_ref[...],
                preferred_element_type=jnp.float32)
    y = y + jnp.dot(z2.astype(jnp.bfloat16), w3z_ref[...],
                    preferred_element_type=jnp.float32)

    # bias + residual add in f32 against the original (non-round-tripped) x
    out_ref[...] = y + b3_ref[...] + x_f32


def pack_params(params):
    """One-time weight/bias packing (transpose, pad z-path to 128 lanes, bf16)."""
    (w11, b11, w12, b12, w2, b2, w3, b3) = params

    w11_t = w11.T.astype(jnp.bfloat16)                                    # (128, 128)
    w12_t = jnp.zeros((D_H, D_ZP), jnp.bfloat16).at[:, :64].set(
        w12.T.astype(jnp.bfloat16))                                       # (128, 128)
    w2_t = w2.T.astype(jnp.bfloat16)                                      # (480, 128)

    # fc3 weight (480, 192) -> (192, 480); split into h-half and (padded) z-half.
    w3_t = w3.T.astype(jnp.bfloat16)                                      # (192, 480)
    w3h = w3_t[:D_H, :]                                                   # (128, 480)
    w3z = jnp.zeros((D_ZP, D_X), jnp.bfloat16).at[:64, :].set(w3_t[D_H:, :])

    b11_2d = b11.reshape(1, D_H).astype(jnp.float32)
    b12_2d = jnp.zeros((1, D_ZP), jnp.float32).at[:, :64].set(b12)
    b2_2d = b2.reshape(1, D_H).astype(jnp.float32)
    b3_2d = b3.reshape(1, D_X).astype(jnp.float32)

    return (w11_t, b11_2d, w12_t, b12_2d, w2_t, b2_2d, w3h, w3z, b3_2d)


def _choose_tile(B, block_batch):
    """Sublane-aligned batch tile: balanced, and >=2 tiles when B >= 16 so the
    'parallel' grid can shard across both TensorCores on v7x."""
    if B < 16:
        return _round_up(max(B, 1), 8)
    max_tile = min(block_batch, _round_up(pl.cdiv(B, 2), 8))
    n_tiles = pl.cdiv(B, max_tile)
    return _round_up(pl.cdiv(B, n_tiles), 8)


@functools.partial(jax.jit, static_argnames=("block_batch",))
def adaptnet_forward(x, z, packed, *, block_batch=1024):
    """x: (B, 480) f32, z: (B, 128) f32, packed = pack_params(params) -> (B, 480) f32."""
    B = x.shape[0]
    tb = _choose_tile(B, block_batch)
    n_tiles = pl.cdiv(B, tb)
    Bp = n_tiles * tb

    # Only the batch axis is ever padded (lane dims pass through untouched),
    # and tile balancing keeps this padding at <= 7 rows in the common case.
    if Bp != B:
        x_in = jnp.zeros((Bp, D_X), x.dtype).at[:B].set(x)
        z_in = jnp.zeros((Bp, D_Z), z.dtype).at[:B].set(z)
    else:
        x_in, z_in = x, z

    # Activation tiles stream over the batch grid; weights stay on block (0, 0)
    # and remain VMEM-resident across grid steps.
    tile = lambda cols: pl.BlockSpec((tb, cols), lambda i: (i, 0))
    const = lambda shape: pl.BlockSpec(shape, lambda i: (0, 0))

    compiler_kwargs = dict(dimension_semantics=("parallel",))
    if tb > 1024:
        # tb <= 1024 (default) keeps the double-buffered working set well under
        # v5e's 16 MiB scoped-VMEM default; only raise the limit beyond that.
        compiler_kwargs["vmem_limit_bytes"] = 64 * 1024 * 1024

    out = pl.pallas_call(
        adaptnet_kernel,
        out_shape=jax.ShapeDtypeStruct((Bp, D_X), jnp.float32),
        grid=(n_tiles,),
        in_specs=[
            tile(D_X),                      # x (f32, residual + fc2 input)
            tile(D_Z),                      # z (f32, cast to bf16 in-kernel)
            const((D_Z, D_H)),              # w11
            const((1, D_H)),                # b11
            const((D_H, D_ZP)),             # w12 (padded to 128 out lanes)
            const((1, D_ZP)),               # b12 (padded)
            const((D_X, D_H)),              # w2
            const((1, D_H)),                # b2
            const((D_H, D_X)),              # w3 h-half
            const((D_ZP, D_X)),             # w3 z-half (rows 64.. zero)
            const((1, D_X)),                # b3
        ],
        out_specs=tile(D_X),
        compiler_params=pltpu.CompilerParams(**compiler_kwargs),
    )(x_in, z_in, *packed)

    return out[:B] if Bp != B else out


def init_params(key):
    """Deterministic synthetic parameters with PyTorch Linear shapes."""
    ks = jax.random.split(key, 8)

    def linear(kw, kb, out_f, in_f):
        scale = 1.0 / jnp.sqrt(in_f)
        w = jax.random.uniform(kw, (out_f, in_f), jnp.float32, -scale, scale)
        b = jax.random.uniform(kb, (out_f,), jnp.float32, -scale, scale)
        return w, b

    w11, b11 = linear(ks[0], ks[1], 128, 64 * 2)          # fc11: 128 -> 128
    w12, b12 = linear(ks[2], ks[3], 64, 128)              # fc12: 128 -> 64
    w2, b2 = linear(ks[4], ks[5], 128, 16 * 15 * 2)       # fc2:  480 -> 128
    w3, b3 = linear(ks[6], ks[7], 16 * 15 * 2, 128 + 64)  # fc3:  192 -> 480
    return (w11, b11, w12, b12, w2, b2, w3, b3)


def reference_forward(x, z, params):
    """Pure-JAX f32 reference matching the PyTorch forward exactly."""
    (w11, b11, w12, b12, w2, b2, w3, b3) = params
    x0 = x
    zz = jax.nn.relu(z @ w11.T + b11)
    zz = jax.nn.relu(zz @ w12.T + b12)
    xx = jax.nn.relu(x @ w2.T + b2)
    cat = jnp.concatenate([xx, zz], axis=1)
    out = cat @ w3.T + b3
    return out + x0


if __name__ == "__main__":
    key = jax.random.PRNGKey(0)
    k_param, k_x, k_z = jax.random.split(key, 3)

    params = init_params(k_param)
    packed = pack_params(params)

    # --- small single-tile case (B = 8) ---
    B = 8
    x = jax.random.normal(k_x, (B, D_X), jnp.float32)     # (8, 480)
    z = jax.random.normal(k_z, (B, D_Z), jnp.float32)     # (8, 128)

    out = jax.block_until_ready(adaptnet_forward(x, z, packed))
    ref = reference_forward(x, z, params)
    assert out.shape == (B, D_X)
    # bf16 matmul operands with f32 accumulation -> loosened tolerance vs f32 ref.
    assert jnp.allclose(out, ref, atol=3e-2, rtol=3e-2), "mismatch vs reference (B=8)"

    # --- multi-tile case (B = 300 -> 2 grid steps, batch-remainder padding path) ---
    B2 = 300
    x2 = jax.random.normal(jax.random.PRNGKey(1), (B2, D_X), jnp.float32)
    z2 = jax.random.normal(jax.random.PRNGKey(2), (B2, D_Z), jnp.float32)

    out2 = jax.block_until_ready(adaptnet_forward(x2, z2, packed))
    ref2 = reference_forward(x2, z2, params)
    assert out2.shape == (B2, D_X)
    assert jnp.allclose(out2, ref2, atol=3e-2, rtol=3e-2), "mismatch vs reference (B=300)"

    print("KERNEL_OK")
</pallas_src>

<mosaic_0001>
module attributes {stable_mosaic.version = 11 : i64} {
  func.func @adaptnet_kernel(%arg0: i32, %arg1: memref<8x480xf32, #tpu.memory_space<vmem>>, %arg2: memref<8x128xf32, #tpu.memory_space<vmem>>, %arg3: memref<128x128xbf16, #tpu.memory_space<vmem>>, %arg4: memref<1x128xf32, #tpu.memory_space<vmem>>, %arg5: memref<128x128xbf16, #tpu.memory_space<vmem>>, %arg6: memref<1x128xf32, #tpu.memory_space<vmem>>, %arg7: memref<480x128xbf16, #tpu.memory_space<vmem>>, %arg8: memref<1x128xf32, #tpu.memory_space<vmem>>, %arg9: memref<128x480xbf16, #tpu.memory_space<vmem>>, %arg10: memref<128x480xbf16, #tpu.memory_space<vmem>>, %arg11: memref<1x480xf32, #tpu.memory_space<vmem>>, %arg12: memref<8x480xf32, #tpu.memory_space<vmem>>) attributes {dimension_semantics = [#tpu.dimension_semantics<parallel>], iteration_bounds = array<i64: 1>, scalar_prefetch = 0 : i64, scratch_operands = 0 : i64, tpu.core_type = #tpu.core_type<tc>, window_params = [{transform_indices = @transform_0, window_bounds = array<i64: 8, 480>}, {transform_indices = @transform_1, window_bounds = array<i64: 8, 128>}, {pipeline_mode = #tpu.pipeline_mode<synchronous>, transform_indices = @transform_2, window_bounds = array<i64: 128, 128>}, {pipeline_mode = #tpu.pipeline_mode<synchronous>, transform_indices = @transform_3, window_bounds = array<i64: 1, 128>}, {pipeline_mode = #tpu.pipeline_mode<synchronous>, transform_indices = @transform_4, window_bounds = array<i64: 128, 128>}, {pipeline_mode = #tpu.pipeline_mode<synchronous>, transform_indices = @transform_5, window_bounds = array<i64: 1, 128>}, {pipeline_mode = #tpu.pipeline_mode<synchronous>, transform_indices = @transform_6, window_bounds = array<i64: 480, 128>}, {pipeline_mode = #tpu.pipeline_mode<synchronous>, transform_indices = @transform_7, window_bounds = array<i64: 1, 128>}, {pipeline_mode = #tpu.pipeline_mode<synchronous>, transform_indices = @transform_8, window_bounds = array<i64: 128, 480>}, {pipeline_mode = #tpu.pipeline_mode<synchronous>, transform_indices = @transform_9, window_bounds = array<i64: 128, 480>}, {pipeline_mode = #tpu.pipeline_mode<synchronous>, transform_indices = @transform_10, window_bounds = array<i64: 1, 480>}, {transform_indices = @transform_11, window_bounds = array<i64: 8, 480>}]} {
    %c0 = arith.constant 0 : index
    %c0_0 = arith.constant 0 : index
    %0 = vector.load %arg1[%c0, %c0_0] : memref<8x480xf32, #tpu.memory_space<vmem>>, vector<8x480xf32>
    %1 = arith.truncf %0 : vector<8x480xf32> to vector<8x480xbf16>
    %c0_1 = arith.constant 0 : index
    %c0_2 = arith.constant 0 : index
    %2 = vector.load %arg2[%c0_1, %c0_2] : memref<8x128xf32, #tpu.memory_space<vmem>>, vector<8x128xf32>
    %3 = arith.truncf %2 : vector<8x128xf32> to vector<8x128xbf16>
    %c0_3 = arith.constant 0 : index
    %c0_4 = arith.constant 0 : index
    %4 = vector.load %arg3[%c0_3, %c0_4] : memref<128x128xbf16, #tpu.memory_space<vmem>>, vector<128x128xbf16>
    %cst = arith.constant dense<0.000000e+00> : vector<8x128xf32>
    %5 = tpu.matmul %3, %4, %cst {dimension_numbers = #tpu.dot_dimension_numbers<[1], [0], [0], [1], [0, 0, 1, 1], [], []>} : vector<8x128xbf16>, vector<128x128xbf16>, vector<8x128xf32> -> vector<8x128xf32>
    %c0_5 = arith.constant 0 : index
    %c0_6 = arith.constant 0 : index
    %6 = vector.load %arg4[%c0_5, %c0_6] : memref<1x128xf32, #tpu.memory_space<vmem>>, vector<1x128xf32>
    %7 = vector.broadcast %6 : vector<1x128xf32> to vector<8x128xf32>
    %8 = arith.addf %5, %7 : vector<8x128xf32>
    %cst_7 = arith.constant 0.000000e+00 : f32
    %9 = vector.broadcast %cst_7 : f32 to vector<8x128xf32>
    %10 = arith.maximumf %8, %9 : vector<8x128xf32>
    %11 = arith.truncf %10 : vector<8x128xf32> to vector<8x128xbf16>
    %c0_8 = arith.constant 0 : index
    %c0_9 = arith.constant 0 : index
    %12 = vector.load %arg5[%c0_8, %c0_9] : memref<128x128xbf16, #tpu.memory_space<vmem>>, vector<128x128xbf16>
    %cst_10 = arith.constant dense<0.000000e+00> : vector<8x128xf32>
    %13 = tpu.matmul %11, %12, %cst_10 {dimension_numbers = #tpu.dot_dimension_numbers<[1], [0], [0], [1], [0, 0, 1, 1], [], []>} : vector<8x128xbf16>, vector<128x128xbf16>, vector<8x128xf32> -> vector<8x128xf32>
    %c0_11 = arith.constant 0 : index
    %c0_12 = arith.constant 0 : index
    %14 = vector.load %arg6[%c0_11, %c0_12] : memref<1x128xf32, #tpu.memory_space<vmem>>, vector<1x128xf32>
    %15 = vector.broadcast %14 : vector<1x128xf32> to vector<8x128xf32>
    %16 = arith.addf %13, %15 : vector<8x128xf32>
    %cst_13 = arith.constant 0.000000e+00 : f32
    %17 = vector.broadcast %cst_13 : f32 to vector<8x128xf32>
    %18 = arith.maximumf %16, %17 : vector<8x128xf32>
    %c0_14 = arith.constant 0 : index
    %c0_15 = arith.constant 0 : index
    %19 = vector.load %arg7[%c0_14, %c0_15] : memref<480x128xbf16, #tpu.memory_space<vmem>>, vector<480x128xbf16>
    %cst_16 = arith.constant dense<0.000000e+00> : vector<8x128xf32>
    %20 = tpu.matmul %1, %19, %cst_16 {dimension_numbers = #tpu.dot_dimension_numbers<[1], [0], [0], [1], [0, 0, 1, 1], [], []>} : vector<8x480xbf16>, vector<480x128xbf16>, vector<8x128xf32> -> vector<8x128xf32>
    %c0_17 = arith.constant 0 : index
    %c0_18 = arith.constant 0 : index
    %21 = vector.load %arg8[%c0_17, %c0_18] : memref<1x128xf32, #tpu.memory_space<vmem>>, vector<1x128xf32>
    %22 = vector.broadcast %21 : vector<1x128xf32> to vector<8x128xf32>
    %23 = arith.addf %20, %22 : vector<8x128xf32>
    %cst_19 = arith.constant 0.000000e+00 : f32
    %24 = vector.broadcast %cst_19 : f32 to vector<8x128xf32>
    %25 = arith.maximumf %23, %24 : vector<8x128xf32>
    %26 = arith.truncf %25 : vector<8x128xf32> to vector<8x128xbf16>
    %c0_20 = arith.constant 0 : index
    %c0_21 = arith.constant 0 : index
    %27 = vector.load %arg9[%c0_20, %c0_21] : memref<128x480xbf16, #tpu.memory_space<vmem>>, vector<128x480xbf16>
    %cst_22 = arith.constant dense<0.000000e+00> : vector<8x480xf32>
    %28 = tpu.matmul %26, %27, %cst_22 {dimension_numbers = #tpu.dot_dimension_numbers<[1], [0], [0], [1], [0, 0, 1, 1], [], []>} : vector<8x128xbf16>, vector<128x480xbf16>, vector<8x480xf32> -> vector<8x480xf32>
    %29 = arith.truncf %18 : vector<8x128xf32> to vector<8x128xbf16>
    %c0_23 = arith.constant 0 : index
    %c0_24 = arith.constant 0 : index
    %30 = vector.load %arg10[%c0_23, %c0_24] : memref<128x480xbf16, #tpu.memory_space<vmem>>, vector<128x480xbf16>
    %cst_25 = arith.constant dense<0.000000e+00> : vector<8x480xf32>
    %31 = tpu.matmul %29, %30, %cst_25 {dimension_numbers = #tpu.dot_dimension_numbers<[1], [0], [0], [1], [0, 0, 1, 1], [], []>} : vector<8x128xbf16>, vector<128x480xbf16>, vector<8x480xf32> -> vector<8x480xf32>
    %32 = arith.addf %28, %31 : vector<8x480xf32>
    %c0_26 = arith.constant 0 : index
    %c0_27 = arith.constant 0 : index
    %33 = vector.load %arg11[%c0_26, %c0_27] : memref<1x480xf32, #tpu.memory_space<vmem>>, vector<1x480xf32>
    %34 = vector.broadcast %33 : vector<1x480xf32> to vector<8x480xf32>
    %35 = arith.addf %32, %34 : vector<8x480xf32>
    %36 = arith.addf %35, %0 : vector<8x480xf32>
    %c0_28 = arith.constant 0 : index
    %c0_29 = arith.constant 0 : index
    %37 = vector.load %arg12[%c0_28, %c0_29] : memref<8x480xf32, #tpu.memory_space<vmem>>, vector<8x480xf32>
    tpu.vector_store %arg12[%c0_28, %c0_29], %36 {strides = array<i32>} : memref<8x480xf32, #tpu.memory_space<vmem>>, vector<8x480xf32>,
    return
  }
  func.func @transform_0(%arg0: i32) -> (i32, i32) {
    %c0_i32 = arith.constant 0 : i32
    %c0_i32_0 = arith.constant 0 : i32
    return %arg0, %c0_i32 : i32, i32
  }
  func.func @transform_1(%arg0: i32) -> (i32, i32) {
    %c0_i32 = arith.constant 0 : i32
    %c0_i32_0 = arith.constant 0 : i32
    return %arg0, %c0_i32 : i32, i32
  }
  func.func @transform_2(%arg0: i32) -> (i32, i32) {
    %c0_i32 = arith.constant 0 : i32
    %c0_i32_0 = arith.constant 0 : i32
    %c0_i32_1 = arith.constant 0 : i32
    return %c0_i32, %c0_i32_0 : i32, i32
  }
  func.func @transform_3(%arg0: i32) -> (i32, i32) {
    %c0_i32 = arith.constant 0 : i32
    %c0_i32_0 = arith.constant 0 : i32
    %c0_i32_1 = arith.constant 0 : i32
    return %c0_i32, %c0_i32_0 : i32, i32
  }
  func.func @transform_4(%arg0: i32) -> (i32, i32) {
    %c0_i32 = arith.constant 0 : i32
    %c0_i32_0 = arith.constant 0 : i32
    %c0_i32_1 = arith.constant 0 : i32
    return %c0_i32, %c0_i32_0 : i32, i32
  }
  func.func @transform_5(%arg0: i32) -> (i32, i32) {
    %c0_i32 = arith.constant 0 : i32
    %c0_i32_0 = arith.constant 0 : i32
    %c0_i32_1 = arith.constant 0 : i32
    return %c0_i32, %c0_i32_0 : i32, i32
  }
  func.func @transform_6(%arg0: i32) -> (i32, i32) {
    %c0_i32 = arith.constant 0 : i32
    %c0_i32_0 = arith.constant 0 : i32
    %c0_i32_1 = arith.constant 0 : i32
    return %c0_i32, %c0_i32_0 : i32, i32
  }
  func.func @transform_7(%arg0: i32) -> (i32, i32) {
    %c0_i32 = arith.constant 0 : i32
    %c0_i32_0 = arith.constant 0 : i32
    %c0_i32_1 = arith.constant 0 : i32
    return %c0_i32, %c0_i32_0 : i32, i32
  }
  func.func @transform_8(%arg0: i32) -> (i32, i32) {
    %c0_i32 = arith.constant 0 : i32
    %c0_i32_0 = arith.constant 0 : i32
    %c0_i32_1 = arith.constant 0 : i32
    return %c0_i32, %c0_i32_0 : i32, i32
  }
  func.func @transform_9(%arg0: i32) -> (i32, i32) {
    %c0_i32 = arith.constant 0 : i32
    %c0_i32_0 = arith.constant 0 : i32
    %c0_i32_1 = arith.constant 0 : i32
    return %c0_i32, %c0_i32_0 : i32, i32
  }
  func.func @transform_10(%arg0: i32) -> (i32, i32) {
    %c0_i32 = arith.constant 0 : i32
    %c0_i32_0 = arith.constant 0 : i32
    %c0_i32_1 = arith.constant 0 : i32
    return %c0_i32, %c0_i32_0 : i32, i32
  }
  func.func @transform_11(%arg0: i32) -> (i32, i32) {
    %c0_i32 = arith.constant 0 : i32
    %c0_i32_0 = arith.constant 0 : i32
    return %arg0, %c0_i32 : i32, i32
  }
}

</mosaic_0001>

<llo_original>
// kernel: adaptnet_forward.1
$region0: #{adaptnet_forward.1}
  #allocation0 [shape = 'u32[]', space=smem, size = 0x4, offset = 0x4, fixed_abs, tag = 'smem constant byte address 0x4 - core index']
  #allocation1 [shape = 'u32[144,128]{1,0:T(1,128)}', space=vmem, size = 0x12000, scoped, tag = 'internal scratch']
  %s0 = inlined_call_operand.vmem [shape: f32[8,480], index: 0, kind: input, shape index: {}]
  %s1 = inlined_call_operand.vmem [shape: f32[8,128], index: 1, kind: input, shape index: {}]
  %s2 = inlined_call_operand.vmem [shape: bf16[128,128], index: 2, kind: input, shape index: {}]
  %s3 = inlined_call_operand.vmem [shape: f32[1,128], index: 3, kind: input, shape index: {}]
  %s4 = inlined_call_operand.vmem [shape: bf16[128,128], index: 4, kind: input, shape index: {}]
  %s5 = inlined_call_operand.vmem [shape: f32[1,128], index: 5, kind: input, shape index: {}]
  %s6 = inlined_call_operand.vmem [shape: bf16[480,128], index: 6, kind: input, shape index: {}]
  %s7 = inlined_call_operand.vmem [shape: f32[1,128], index: 7, kind: input, shape index: {}]
  %s8 = inlined_call_operand.vmem [shape: bf16[128,480], index: 8, kind: input, shape index: {}]
  %s9 = inlined_call_operand.vmem [shape: bf16[128,480], index: 9, kind: input, shape index: {}]
  %s10 = inlined_call_operand.vmem [shape: f32[1,480], index: 10, kind: input, shape index: {}]
  %s11 = inlined_call_operand.hbm [shape: f32[8,480], index: 11, kind: output, shape index: {}]
  %s12 = sld [smem:[#allocation0]]
  $region54: #{adaptnet_forward.1} parent=0
    _
  %s14 = ssub.s32 1, %s12
  %s15 = scalar_select 0, %s14, %s12
  $region1: #{adaptnet_forward.1} parent=0
    #allocation2 [shape = 'u8[16384]{0}', space=vmem, size = 0x4000, scoped, tag = 'output window, operand 0, single buffered']
    #allocation3 [shape = 's32[1]{0}', space=sflag, size = 0x4, scoped, tag = 'scoped memory for adaptnet_forward.1']
    %16 = vsyncpa [#allocation3], 0
    // Predicated region
    $region2: #{adaptnet_forward.1} parent=1 // pred_check
      _
    $region3: #{adaptnet_forward.1} parent=1 // pred_check_branch
      %18 = sbr.rel (0) target = $region5
    $region4: #{adaptnet_forward.1} parent=1 // pred_region
      _
    $region5: #{adaptnet_forward.1} parent=1 // pred_fallthru
      _
    // Predicated region
    $region6: #{adaptnet_forward.1} parent=1 // pred_check
      _
    $region7: #{adaptnet_forward.1} parent=1 // pred_check_branch
      %20 = sbr.rel (0) target = $region9
    $region8: #{adaptnet_forward.1} parent=1 // pred_region
      _
    $region9: #{adaptnet_forward.1} parent=1 // pred_fallthru
      _
    // Predicated region
    $region10: #{adaptnet_forward.1} parent=1 // pred_check
      _
    $region11: #{adaptnet_forward.1} parent=1 // pred_check_branch
      %22 = sbr.rel (0) target = $region13
    $region12: #{adaptnet_forward.1} parent=1 // pred_region
      _
    $region13: #{adaptnet_forward.1} parent=1 // pred_fallthru
      _
    // Predicated region
    $region14: #{adaptnet_forward.1} parent=1 // pred_check
      _
    $region15: #{adaptnet_forward.1} parent=1 // pred_check_branch
      %24 = sbr.rel (0) target = $region17
    $region16: #{adaptnet_forward.1} parent=1 // pred_region
      _
    $region17: #{adaptnet_forward.1} parent=1 // pred_fallthru
      _
    // Predicated region
    $region18: #{adaptnet_forward.1} parent=1 // pred_check
      _
    $region19: #{adaptnet_forward.1} parent=1 // pred_check_branch
      %26 = sbr.rel (0) target = $region21
    $region20: #{adaptnet_forward.1} parent=1 // pred_region
      _
    $region21: #{adaptnet_forward.1} parent=1 // pred_fallthru
      _
    // Predicated region
    $region22: #{adaptnet_forward.1} parent=1 // pred_check
      _
    $region23: #{adaptnet_forward.1} parent=1 // pred_check_branch
      %28 = sbr.rel (0) target = $region25
    $region24: #{adaptnet_forward.1} parent=1 // pred_region
      _
    $region25: #{adaptnet_forward.1} parent=1 // pred_fallthru
      _
    // Predicated region
    $region26: #{adaptnet_forward.1} parent=1 // pred_check
      _
    $region27: #{adaptnet_forward.1} parent=1 // pred_check_branch
      %30 = sbr.rel (0) target = $region29
    $region28: #{adaptnet_forward.1} parent=1 // pred_region
      _
    $region29: #{adaptnet_forward.1} parent=1 // pred_fallthru
      _
    // Predicated region
    $region30: #{adaptnet_forward.1} parent=1 // pred_check
      _
    $region31: #{adaptnet_forward.1} parent=1 // pred_check_branch
      %32 = sbr.rel (0) target = $region33
    $region32: #{adaptnet_forward.1} parent=1 // pred_region
      _
    $region33: #{adaptnet_forward.1} parent=1 // pred_fallthru
      _
    // Predicated region
    $region34: #{adaptnet_forward.1} parent=1 // pred_check
      _
    $region35: #{adaptnet_forward.1} parent=1 // pred_check_branch
      %34 = sbr.rel (0) target = $region37
    $region36: #{adaptnet_forward.1} parent=1 // pred_region
      _
    $region37: #{adaptnet_forward.1} parent=1 // pred_fallthru
      _
    // Predicated region
    $region38: #{adaptnet_forward.1} parent=1 // pred_check
      _
    $region39: #{adaptnet_forward.1} parent=1 // pred_check_branch
      %36 = sbr.rel (0) target = $region41
    $region40: #{adaptnet_forward.1} parent=1 // pred_region
      _
    $region41: #{adaptnet_forward.1} parent=1 // pred_fallthru
      _
    // Predicated region
    $region42: #{adaptnet_forward.1} parent=1 // pred_check
      _
    $region43: #{adaptnet_forward.1} parent=1 // pred_check_branch
      %38 = sbr.rel (0) target = $region45
    $region44: #{adaptnet_forward.1} parent=1 // pred_region
      _
    $region45: #{adaptnet_forward.1} parent=1 // pred_fallthru
      _
    %v40 = vld [vmem:[%s0] sm:$0xff]
    %v41 = vld [vmem:[%s0 + $0x8] sm:$0xff]
    %v42 = vld [vmem:[%s0 + $0x10] sm:$0xff]
    %v43 = vld [vmem:[%s0 + $0x18] sm:$0xff]
    %v44 = vpack.c.bf16 %v40, %v40
    %v45 = vpack.c.bf16 %v41, %v41
    %v46 = vpack.c.bf16 %v42, %v42
    %v47 = vpack.c.bf16 %v43, %v43
    %v48 = vld [vmem:[%s1] sm:$0xff]
    %v49 = vpack.c.bf16 %v48, %v48
    %v50 = vld [vmem:[%s2] sm:$0xf]
    %v51 = vld [vmem:[%s2 + $0x4] sm:$0xf]
    %v52 = vld [vmem:[%s2 + $0x8] sm:$0xf]
    %v53 = vld [vmem:[%s2 + $0xc] sm:$0xf]
    %v54 = vld [vmem:[%s2 + $0x10] sm:$0xf]
    %v55 = vld [vmem:[%s2 + $0x14] sm:$0xf]
    %v56 = vld [vmem:[%s2 + $0x18] sm:$0xf]
    %v57 = vld [vmem:[%s2 + $0x1c] sm:$0xf]
    %v58 = vld [vmem:[%s2 + $0x20] sm:$0xf]
    %v59 = vld [vmem:[%s2 + $0x24] sm:$0xf]
    %v60 = vld [vmem:[%s2 + $0x28] sm:$0xf]
    %v61 = vld [vmem:[%s2 + $0x2c] sm:$0xf]
    %v62 = vld [vmem:[%s2 + $0x30] sm:$0xf]
    %v63 = vld [vmem:[%s2 + $0x34] sm:$0xf]
    %v64 = vld [vmem:[%s2 + $0x38] sm:$0xf]
    %v65 = vld [vmem:[%s2 + $0x3c] sm:$0xf]
    %v66 = vld [vmem:[%s3] sm:$0x1]
    %v68 = vlaneseq
    %v69 = vshrl.u32 %v68, 7
    %v70 = vsub.s32 0, %v69
    %v71 = vrot.slane %v66, %v70
    %v89 = vunpack.c.l.b16 %v50
    %v90 = vunpack.c.l.b16 %v51
    %v91 = vunpack.c.l.b16 %v52
    %v92 = vunpack.c.l.b16 %v53
    %v93 = vunpack.c.l.b16 %v54
    %v94 = vunpack.c.l.b16 %v55
    %v95 = vunpack.c.l.b16 %v56
    %v96 = vunpack.c.l.b16 %v57
    %v97 = vunpack.c.l.b16 %v58
    %v98 = vunpack.c.l.b16 %v59
    %v99 = vunpack.c.l.b16 %v60
    %v100 = vunpack.c.l.b16 %v61
    %v101 = vunpack.c.l.b16 %v62
    %v102 = vunpack.c.l.b16 %v63
    %v103 = vunpack.c.l.b16 %v64
    %v104 = vunpack.c.l.b16 %v65
    %v105 = vpack.c.b16 %v90, %v89
    %v106 = vpack.c.b16 %v92, %v91
    %v107 = vpack.c.b16 %v94, %v93
    %v108 = vpack.c.b16 %v96, %v95
    %v109 = vpack.c.b16 %v98, %v97
    %v110 = vpack.c.b16 %v100, %v99
    %v111 = vpack.c.b16 %v102, %v101
    %v112 = vpack.c.b16 %v104, %v103
    %121 = vmatprep.subr.bf16.mxu0 0
    %122 = vmatpush1.bf16.msra.mxu0 %v105
    %123 = vmatprep.subr.bf16.mxu0 0
    %124 = vmatpush1.bf16.msra.mxu0 %v106
    %125 = vmatprep.subr.bf16.mxu0 0
    %126 = vmatpush1.bf16.msra.mxu0 %v107
    %127 = vmatprep.subr.bf16.mxu0 0
    %128 = vmatpush1.bf16.msra.mxu0 %v108
    %129 = vmatprep.subr.bf16.mxu0 0
    %130 = vmatpush1.bf16.msra.mxu0 %v109
    %131 = vmatprep.subr.bf16.mxu0 0
    %132 = vmatpush1.bf16.msra.mxu0 %v110
    %133 = vmatprep.subr.bf16.mxu0 0
    %134 = vmatpush1.bf16.msra.mxu0 %v111
    %135 = vmatprep.subr.bf16.mxu0 0
    %136 = vmatpush1.bf16.msra.mxu0 %v112
    %137 = vmatprep.subr.bf16.mxu0 0
    %138 = vmatpush1.bf16.msra.mxu0 0
    %139 = vmatprep.subr.bf16.mxu0 0
    %140 = vmatpush1.bf16.msra.mxu0 0
    %141 = vmatprep.subr.bf16.mxu0 0
    %142 = vmatpush1.bf16.msra.mxu0 0
    %143 = vmatprep.subr.bf16.mxu0 0
    %144 = vmatpush1.bf16.msra.mxu0 0
    %145 = vmatprep.subr.bf16.mxu0 0
    %146 = vmatpush1.bf16.msra.mxu0 0
    %147 = vmatprep.subr.bf16.mxu0 0
    %148 = vmatpush1.bf16.msra.mxu0 0
    %149 = vmatprep.subr.bf16.mxu0 0
    %150 = vmatpush1.bf16.msra.mxu0 0
    %151 = vmatprep.subr.bf16.mxu0 0
    %152 = vmatpush1.bf16.msra.mxu0 0
    %153 = vmatprep.mubr.bf16.mxu0 0
    %154 = vmatmul.mubr.bf16.gmra.mrb[0].mxu0 %v49
    %v155 = vpop.f32.mrb[0].mxu0
    %v156 = vadd.f32 %v71, %v155
    %v157 = vpop.f32.mrb[0].mxu0
    %v158 = vpop.f32.mrb[0].mxu0
    %v159 = vpop.f32.mrb[0].mxu0
    %160 = vdwg.mxu0
    %v161 = vmax.f32 %v156, 0.0
    %v162 = vpack.c.bf16 %v161, %v161
    %v163 = vld [vmem:[%s4] sm:$0xf]
    %v164 = vld [vmem:[%s4 + $0x4] sm:$0xf]
    %v165 = vld [vmem:[%s4 + $0x8] sm:$0xf]
    %v166 = vld [vmem:[%s4 + $0xc] sm:$0xf]
    %v167 = vld [vmem:[%s4 + $0x10] sm:$0xf]
    %v168 = vld [vmem:[%s4 + $0x14] sm:$0xf]
    %v169 = vld [vmem:[%s4 + $0x18] sm:$0xf]
    %v170 = vld [vmem:[%s4 + $0x1c] sm:$0xf]
    %v171 = vld [vmem:[%s4 + $0x20] sm:$0xf]
    %v172 = vld [vmem:[%s4 + $0x24] sm:$0xf]
    %v173 = vld [vmem:[%s4 + $0x28] sm:$0xf]
    %v174 = vld [vmem:[%s4 + $0x2c] sm:$0xf]
    %v175 = vld [vmem:[%s4 + $0x30] sm:$0xf]
    %v176 = vld [vmem:[%s4 + $0x34] sm:$0xf]
    %v177 = vld [vmem:[%s4 + $0x38] sm:$0xf]
    %v178 = vld [vmem:[%s4 + $0x3c] sm:$0xf]
    %v179 = vld [vmem:[%s5] sm:$0x1]
    %v181 = vlaneseq
    %v182 = vshrl.u32 %v181, 7
    %v183 = vsub.s32 0, %v182
    %v184 = vrot.slane %v179, %v183
    %v202 = vunpack.c.l.b16 %v163
    %v203 = vunpack.c.l.b16 %v164
    %v204 = vunpack.c.l.b16 %v165
    %v205 = vunpack.c.l.b16 %v166
    %v206 = vunpack.c.l.b16 %v167
    %v207 = vunpack.c.l.b16 %v168
    %v208 = vunpack.c.l.b16 %v169
    %v209 = vunpack.c.l.b16 %v170
    %v210 = vunpack.c.l.b16 %v171
    %v211 = vunpack.c.l.b16 %v172
    %v212 = vunpack.c.l.b16 %v173
    %v213 = vunpack.c.l.b16 %v174
    %v214 = vunpack.c.l.b16 %v175
    %v215 = vunpack.c.l.b16 %v176
    %v216 = vunpack.c.l.b16 %v177
    %v217 = vunpack.c.l.b16 %v178
    %v218 = vpack.c.b16 %v203, %v202
    %v219 = vpack.c.b16 %v205, %v204
    %v220 = vpack.c.b16 %v207, %v206
    %v221 = vpack.c.b16 %v209, %v208
    %v222 = vpack.c.b16 %v211, %v210
    %v223 = vpack.c.b16 %v213, %v212
    %v224 = vpack.c.b16 %v215, %v214
    %v225 = vpack.c.b16 %v217, %v216
    %234 = vmatprep.subr.bf16.mxu0 0
    %235 = vmatpush1.bf16.msra.mxu0 %v218
    %236 = vmatprep.subr.bf16.mxu0 0
    %237 = vmatpush1.bf16.msra.mxu0 %v219
    %238 = vmatprep.subr.bf16.mxu0 0
    %239 = vmatpush1.bf16.msra.mxu0 %v220
    %240 = vmatprep.subr.bf16.mxu0 0
    %241 = vmatpush1.bf16.msra.mxu0 %v221
    %242 = vmatprep.subr.bf16.mxu0 0
    %243 = vmatpush1.bf16.msra.mxu0 %v222
    %244 = vmatprep.subr.bf16.mxu0 0
    %245 = vmatpush1.bf16.msra.mxu0 %v223
    %246 = vmatprep.subr.bf16.mxu0 0
    %247 = vmatpush1.bf16.msra.mxu0 %v224
    %248 = vmatprep.subr.bf16.mxu0 0
    %249 = vmatpush1.bf16.msra.mxu0 %v225
    %250 = vmatprep.subr.bf16.mxu0 0
    %251 = vmatpush1.bf16.msra.mxu0 0
    %252 = vmatprep.subr.bf16.mxu0 0
    %253 = vmatpush1.bf16.msra.mxu0 0
    %254 = vmatprep.subr.bf16.mxu0 0
    %255 = vmatpush1.bf16.msra.mxu0 0
    %256 = vmatprep.subr.bf16.mxu0 0
    %257 = vmatpush1.bf16.msra.mxu0 0
    %258 = vmatprep.subr.bf16.mxu0 0
    %259 = vmatpush1.bf16.msra.mxu0 0
    %260 = vmatprep.subr.bf16.mxu0 0
    %261 = vmatpush1.bf16.msra.mxu0 0
    %262 = vmatprep.subr.bf16.mxu0 0
    %263 = vmatpush1.bf16.msra.mxu0 0
    %264 = vmatprep.subr.bf16.mxu0 0
    %265 = vmatpush1.bf16.msra.mxu0 0
    %266 = vmatprep.mubr.bf16.mxu0 0
    %267 = vmatmul.mubr.bf16.gmra.mrb[0].mxu0 %v162
    %v268 = vpop.f32.mrb[0].mxu0
    %v269 = vadd.f32 %v184, %v268
    %v270 = vpop.f32.mrb[0].mxu0
    %v271 = vpop.f32.mrb[0].mxu0
    %v272 = vpop.f32.mrb[0].mxu0
    %273 = vdwg.mxu0
    %v274 = vmax.f32 %v269, 0.0
    %v275 = vld [vmem:[%s6] sm:$0xf]
    %v276 = vld [vmem:[%s6 + $0x4] sm:$0xf]
    %v277 = vld [vmem:[%s6 + $0x8] sm:$0xf]
    %v278 = vld [vmem:[%s6 + $0xc] sm:$0xf]
    %v279 = vld [vmem:[%s6 + $0x10] sm:$0xf]
    %v280 = vld [vmem:[%s6 + $0x14] sm:$0xf]
    %v281 = vld [vmem:[%s6 + $0x18] sm:$0xf]
    %v282 = vld [vmem:[%s6 + $0x1c] sm:$0xf]
    %v283 = vld [vmem:[%s6 + $0x20] sm:$0xf]
    %v284 = vld [vmem:[%s6 + $0x24] sm:$0xf]
    %v285 = vld [vmem:[%s6 + $0x28] sm:$0xf]
    %v286 = vld [vmem:[%s6 + $0x2c] sm:$0xf]
    %v287 = vld [vmem:[%s6 + $0x30] sm:$0xf]
    %v288 = vld [vmem:[%s6 + $0x34] sm:$0xf]
    %v289 = vld [vmem:[%s6 + $0x38] sm:$0xf]
    %v290 = vld [vmem:[%s6 + $0x3c] sm:$0xf]
    %v291 = vld [vmem:[%s6 + $0x40] sm:$0xf]
    %v292 = vld [vmem:[%s6 + $0x44] sm:$0xf]
    %v293 = vld [vmem:[%s6 + $0x48] sm:$0xf]
    %v294 = vld [vmem:[%s6 + $0x4c] sm:$0xf]
    %v295 = vld [vmem:[%s6 + $0x50] sm:$0xf]
    %v296 = vld [vmem:[%s6 + $0x54] sm:$0xf]
    %v297 = vld [vmem:[%s6 + $0x58] sm:$0xf]
    %v298 = vld [vmem:[%s6 + $0x5c] sm:$0xf]
    %v299 = vld [vmem:[%s6 + $0x60] sm:$0xf]
    %v300 = vld [vmem:[%s6 + $0x64] sm:$0xf]
    %v301 = vld [vmem:[%s6 + $0x68] sm:$0xf]
    %v302 = vld [vmem:[%s6 + $0x6c] sm:$0xf]
    %v303 = vld [vmem:[%s6 + $0x70] sm:$0xf]
    %v304 = vld [vmem:[%s6 + $0x74] sm:$0xf]
    %v305 = vld [vmem:[%s6 + $0x78] sm:$0xf]
    %v306 = vld [vmem:[%s6 + $0x7c] sm:$0xf]
    %v307 = vld [vmem:[%s6 + $0x80] sm:$0xf]
    %v308 = vld [vmem:[%s6 + $0x84] sm:$0xf]
    %v309 = vld [vmem:[%s6 + $0x88] sm:$0xf]
    %v310 = vld [vmem:[%s6 + $0x8c] sm:$0xf]
    %v311 = vld [vmem:[%s6 + $0x90] sm:$0xf]
    %v312 = vld [vmem:[%s6 + $0x94] sm:$0xf]
    %v313 = vld [vmem:[%s6 + $0x98] sm:$0xf]
    %v314 = vld [vmem:[%s6 + $0x9c] sm:$0xf]
    %v315 = vld [vmem:[%s6 + $0xa0] sm:$0xf]
    %v316 = vld [vmem:[%s6 + $0xa4] sm:$0xf]
    %v317 = vld [vmem:[%s6 + $0xa8] sm:$0xf]
    %v318 = vld [vmem:[%s6 + $0xac] sm:$0xf]
    %v319 = vld [vmem:[%s6 + $0xb0] sm:$0xf]
    %v320 = vld [vmem:[%s6 + $0xb4] sm:$0xf]
    %v321 = vld [vmem:[%s6 + $0xb8] sm:$0xf]
    %v322 = vld [vmem:[%s6 + $0xbc] sm:$0xf]
    %v323 = vld [vmem:[%s6 + $0xc0] sm:$0xf]
    %v324 = vld [vmem:[%s6 + $0xc4] sm:$0xf]
    %v325 = vld [vmem:[%s6 + $0xc8] sm:$0xf]
    %v326 = vld [vmem:[%s6 + $0xcc] sm:$0xf]
    %v327 = vld [vmem:[%s6 + $0xd0] sm:$0xf]
    %v328 = vld [vmem:[%s6 + $0xd4] sm:$0xf]
    %v329 = vld [vmem:[%s6 + $0xd8] sm:$0xf]
    %v330 = vld [vmem:[%s6 + $0xdc] sm:$0xf]
    %v331 = vld [vmem:[%s6 + $0xe0] sm:$0xf]
    %v332 = vld [vmem:[%s6 + $0xe4] sm:$0xf]
    %v333 = vld [vmem:[%s6 + $0xe8] sm:$0xf]
    %v334 = vld [vmem:[%s6 + $0xec] sm:$0xf]
    %v335 = vld [vmem:[%s7] sm:$0x1]
    %v337 = vlaneseq
    %v338 = vshrl.u32 %v337, 7
    %v339 = vsub.s32 0, %v338
    %v340 = vrot.slane %v335, %v339
    %v402 = vunpack.c.l.b16 %v275
    %v403 = vunpack.c.l.b16 %v276
    %v404 = vunpack.c.l.b16 %v277
    %v405 = vunpack.c.l.b16 %v278
    %v406 = vunpack.c.l.b16 %v279
    %v407 = vunpack.c.l.b16 %v280
    %v408 = vunpack.c.l.b16 %v281
    %v409 = vunpack.c.l.b16 %v282
    %v410 = vunpack.c.l.b16 %v283
    %v411 = vunpack.c.l.b16 %v284
    %v412 = vunpack.c.l.b16 %v285
    %v413 = vunpack.c.l.b16 %v286
    %v414 = vunpack.c.l.b16 %v287
    %v415 = vunpack.c.l.b16 %v288
    %v416 = vunpack.c.l.b16 %v289
    %v417 = vunpack.c.l.b16 %v290
    %v418 = vunpack.c.l.b16 %v291
    %v419 = vunpack.c.l.b16 %v292
    %v420 = vunpack.c.l.b16 %v293
    %v421 = vunpack.c.l.b16 %v294
    %v422 = vunpack.c.l.b16 %v295
    %v423 = vunpack.c.l.b16 %v296
    %v424 = vunpack.c.l.b16 %v297
    %v425 = vunpack.c.l.b16 %v298
    %v426 = vunpack.c.l.b16 %v299
    %v427 = vunpack.c.l.b16 %v300
    %v428 = vunpack.c.l.b16 %v301
    %v429 = vunpack.c.l.b16 %v302
    %v430 = vunpack.c.l.b16 %v303
    %v431 = vunpack.c.l.b16 %v304
    %v432 = vunpack.c.l.b16 %v305
    %v433 = vunpack.c.l.b16 %v306
    %v434 = vunpack.c.l.b16 %v307
    %v435 = vunpack.c.l.b16 %v308
    %v436 = vunpack.c.l.b16 %v309
    %v437 = vunpack.c.l.b16 %v310
    %v438 = vunpack.c.l.b16 %v311
    %v439 = vunpack.c.l.b16 %v312
    %v440 = vunpack.c.l.b16 %v313
    %v441 = vunpack.c.l.b16 %v314
    %v442 = vunpack.c.l.b16 %v315
    %v443 = vunpack.c.l.b16 %v316
    %v444 = vunpack.c.l.b16 %v317
    %v445 = vunpack.c.l.b16 %v318
    %v446 = vunpack.c.l.b16 %v319
    %v447 = vunpack.c.l.b16 %v320
    %v448 = vunpack.c.l.b16 %v321
    %v449 = vunpack.c.l.b16 %v322
    %v450 = vunpack.c.l.b16 %v323
    %v451 = vunpack.c.l.b16 %v324
    %v452 = vunpack.c.l.b16 %v325
    %v453 = vunpack.c.l.b16 %v326
    %v454 = vunpack.c.l.b16 %v327
    %v455 = vunpack.c.l.b16 %v328
    %v456 = vunpack.c.l.b16 %v329
    %v457 = vunpack.c.l.b16 %v330
    %v458 = vunpack.c.l.b16 %v331
    %v459 = vunpack.c.l.b16 %v332
    %v460 = vunpack.c.l.b16 %v333
    %v461 = vunpack.c.l.b16 %v334
    %v462 = vpack.c.b16 %v403, %v402
    %v463 = vpack.c.b16 %v405, %v404
    %v464 = vpack.c.b16 %v407, %v406
    %v465 = vpack.c.b16 %v409, %v408
    %v466 = vpack.c.b16 %v411, %v410
    %v467 = vpack.c.b16 %v413, %v412
    %v468 = vpack.c.b16 %v415, %v414
    %v469 = vpack.c.b16 %v417, %v416
    %v470 = vpack.c.b16 %v419, %v418
    %v471 = vpack.c.b16 %v421, %v420
    %v472 = vpack.c.b16 %v423, %v422
    %v473 = vpack.c.b16 %v425, %v424
    %v474 = vpack.c.b16 %v427, %v426
    %v475 = vpack.c.b16 %v429, %v428
    %v476 = vpack.c.b16 %v431, %v430
    %v477 = vpack.c.b16 %v433, %v432
    %v478 = vpack.c.b16 %v435, %v434
    %v479 = vpack.c.b16 %v437, %v436
    %v480 = vpack.c.b16 %v439, %v438
    %v481 = vpack.c.b16 %v441, %v440
    %v482 = vpack.c.b16 %v443, %v442
    %v483 = vpack.c.b16 %v445, %v444
    %v484 = vpack.c.b16 %v447, %v446
    %v485 = vpack.c.b16 %v449, %v448
    %v486 = vpack.c.b16 %v451, %v450
    %v487 = vpack.c.b16 %v453, %v452
    %v488 = vpack.c.b16 %v455, %v454
    %v489 = vpack.c.b16 %v457, %v456
    %v490 = vpack.c.b16 %v459, %v458
    %v491 = vpack.c.b16 %v461, %v460
    %vm522 = vcmask 785408
    %v524 = vsel %vm522, %v47, 0
    %526 = vmatprep.subr.bf16.mxu0 0
    %527 = vmatpush1.bf16.msra.mxu0 %v462
    %528 = vmatprep.subr.bf16.mxu0 0
    %529 = vmatpush1.bf16.msra.mxu0 %v463
    %530 = vmatprep.subr.bf16.mxu0 0
    %531 = vmatpush1.bf16.msra.mxu0 %v464
    %532 = vmatprep.subr.bf16.mxu0 0
    %533 = vmatpush1.bf16.msra.mxu0 %v465
    %534 = vmatprep.subr.bf16.mxu0 0
    %535 = vmatpush1.bf16.msra.mxu0 %v466
    %536 = vmatprep.subr.bf16.mxu0 0
    %537 = vmatpush1.bf16.msra.mxu0 %v467
    %538 = vmatprep.subr.bf16.mxu0 0
    %539 = vmatpush1.bf16.msra.mxu0 %v468
    %540 = vmatprep.subr.bf16.mxu0 0
    %541 = vmatpush1.bf16.msra.mxu0 %v469
    %542 = vmatprep.subr.bf16.mxu0 0
    %543 = vmatpush1.bf16.msra.mxu0 %v470
    %544 = vmatprep.subr.bf16.mxu0 0
    %545 = vmatpush1.bf16.msra.mxu0 %v471
    %546 = vmatprep.subr.bf16.mxu0 0
    %547 = vmatpush1.bf16.msra.mxu0 %v472
    %548 = vmatprep.subr.bf16.mxu0 0
    %549 = vmatpush1.bf16.msra.mxu0 %v473
    %550 = vmatprep.subr.bf16.mxu0 0
    %551 = vmatpush1.bf16.msra.mxu0 %v474
    %552 = vmatprep.subr.bf16.mxu0 0
    %553 = vmatpush1.bf16.msra.mxu0 %v475
    %554 = vmatprep.subr.bf16.mxu0 0
    %555 = vmatpush1.bf16.msra.mxu0 %v476
    %556 = vmatprep.subr.bf16.mxu0 0
    %557 = vmatpush1.bf16.msra.mxu0 %v477
    %558 = vmatprep.mubr.bf16.mxu0 %v45
    %559 = vmatmul.mubr.bf16.gmra.mrb[0].mxu0 %v44
    %v560 = vpop.f32.mrb[0].mxu0
    %v561 = vadd.f32 %v340, %v560
    %v562 = vpop.f32.mrb[0].mxu0
    %v563 = vpop.f32.mrb[0].mxu0
    %v564 = vpop.f32.mrb[0].mxu0
    %565 = vdwg.mxu0
    %566 = vmatprep.subr.bf16.mxu0 0
    %567 = vmatpush1.bf16.msra.mxu0 %v478
    %568 = vmatprep.subr.bf16.mxu0 0
    %569 = vmatpush1.bf16.msra.mxu0 %v479
    %570 = vmatprep.subr.bf16.mxu0 0
    %571 = vmatpush1.bf16.msra.mxu0 %v480
    %572 = vmatprep.subr.bf16.mxu0 0
    %573 = vmatpush1.bf16.msra.mxu0 %v481
    %574 = vmatprep.subr.bf16.mxu0 0
    %575 = vmatpush1.bf16.msra.mxu0 %v482
    %576 = vmatprep.subr.bf16.mxu0 0
    %577 = vmatpush1.bf16.msra.mxu0 %v483
    %578 = vmatprep.subr.bf16.mxu0 0
    %579 = vmatpush1.bf16.msra.mxu0 %v484
    %580 = vmatprep.subr.bf16.mxu0 0
    %581 = vmatpush1.bf16.msra.mxu0 %v485
    %582 = vmatprep.subr.bf16.mxu0 0
    %583 = vmatpush1.bf16.msra.mxu0 %v486
    %584 = vmatprep.subr.bf16.mxu0 0
    %585 = vmatpush1.bf16.msra.mxu0 %v487
    %586 = vmatprep.subr.bf16.mxu0 0
    %587 = vmatpush1.bf16.msra.mxu0 %v488
    %588 = vmatprep.subr.bf16.mxu0 0
    %589 = vmatpush1.bf16.msra.mxu0 %v489
    %590 = vmatprep.subr.bf16.mxu0 0
    %591 = vmatpush1.bf16.msra.mxu0 %v490
    %592 = vmatprep.subr.bf16.mxu0 0
    %593 = vmatpush1.bf16.msra.mxu0 %v491
    %594 = vmatprep.subr.bf16.mxu0 0
    %595 = vmatpush1.bf16.msra.mxu0 0
    %596 = vmatprep.subr.bf16.mxu0 0
    %597 = vmatpush1.bf16.msra.mxu0 0
    %598 = vmatprep.mubr.bf16.mxu0 %v524
    %599 = vmatmul.mubr.bf16.gmra.mrb[0].mxu0 %v46
    %v600 = vpop.f32.mrb[0].mxu0
    %v601 = vadd.f32 %v561, %v600
    %v602 = vpop.f32.mrb[0].mxu0
    %v603 = vpop.f32.mrb[0].mxu0
    %v604 = vpop.f32.mrb[0].mxu0
    %605 = vdwg.mxu0
    %v606 = vmax.f32 %v601, 0.0
    %v607 = vpack.c.bf16 %v606, %v606
    %v608 = vld [vmem:[%s8] sm:$0xff]
    %v609 = vld [vmem:[%s8 + $0x8] sm:$0xff]
    %v610 = vld [vmem:[%s8 + $0x10] sm:$0xff]
    %v611 = vld [vmem:[%s8 + $0x18] sm:$0xff]
    %v612 = vld [vmem:[%s8 + $0x20] sm:$0xff]
    %v613 = vld [vmem:[%s8 + $0x28] sm:$0xff]
    %v614 = vld [vmem:[%s8 + $0x30] sm:$0xff]
    %v615 = vld [vmem:[%s8 + $0x38] sm:$0xff]
    %v616 = vld [vmem:[%s8 + $0x40] sm:$0xff]
    %v617 = vld [vmem:[%s8 + $0x48] sm:$0xff]
    %v618 = vld [vmem:[%s8 + $0x50] sm:$0xff]
    %v619 = vld [vmem:[%s8 + $0x58] sm:$0xff]
    %v620 = vld [vmem:[%s8 + $0x60] sm:$0xff]
    %v621 = vld [vmem:[%s8 + $0x68] sm:$0xff]
    %v622 = vld [vmem:[%s8 + $0x70] sm:$0xff]
    %v623 = vld [vmem:[%s8 + $0x78] sm:$0xff]
    %v624 = vld [vmem:[%s8 + $0x80] sm:$0xff]
    %v625 = vld [vmem:[%s8 + $0x88] sm:$0xff]
    %v626 = vld [vmem:[%s8 + $0x90] sm:$0xff]
    %v627 = vld [vmem:[%s8 + $0x98] sm:$0xff]
    %v628 = vld [vmem:[%s8 + $0xa0] sm:$0xff]
    %v629 = vld [vmem:[%s8 + $0xa8] sm:$0xff]
    %v630 = vld [vmem:[%s8 + $0xb0] sm:$0xff]
    %v631 = vld [vmem:[%s8 + $0xb8] sm:$0xff]
    %v632 = vld [vmem:[%s8 + $0xc0] sm:$0xff]
    %v633 = vld [vmem:[%s8 + $0xc8] sm:$0xff]
    %v634 = vld [vmem:[%s8 + $0xd0] sm:$0xff]
    %v635 = vld [vmem:[%s8 + $0xd8] sm:$0xff]
    %v636 = vld [vmem:[%s8 + $0xe0] sm:$0xff]
    %v637 = vld [vmem:[%s8 + $0xe8] sm:$0xff]
    %v638 = vld [vmem:[%s8 + $0xf0] sm:$0xff]
    %v639 = vld [vmem:[%s8 + $0xf8] sm:$0xff]
    %v640 = vpack.c.bf16 %v274, %v274
    %v641 = vld [vmem:[%s9] sm:$0xff]
    %v642 = vld [vmem:[%s9 + $0x8] sm:$0xff]
    %v643 = vld [vmem:[%s9 + $0x10] sm:$0xff]
    %v644 = vld [vmem:[%s9 + $0x18] sm:$0xff]
    %v645 = vld [vmem:[%s9 + $0x20] sm:$0xff]
    %v646 = vld [vmem:[%s9 + $0x28] sm:$0xff]
    %v647 = vld [vmem:[%s9 + $0x30] sm:$0xff]
    %v648 = vld [vmem:[%s9 + $0x38] sm:$0xff]
    %v649 = vld [vmem:[%s9 + $0x40] sm:$0xff]
    %v650 = vld [vmem:[%s9 + $0x48] sm:$0xff]
    %v651 = vld [vmem:[%s9 + $0x50] sm:$0xff]
    %v652 = vld [vmem:[%s9 + $0x58] sm:$0xff]
    %v653 = vld [vmem:[%s9 + $0x60] sm:$0xff]
    %v654 = vld [vmem:[%s9 + $0x68] sm:$0xff]
    %v655 = vld [vmem:[%s9 + $0x70] sm:$0xff]
    %v656 = vld [vmem:[%s9 + $0x78] sm:$0xff]
    %v657 = vld [vmem:[%s9 + $0x80] sm:$0xff]
    %v658 = vld [vmem:[%s9 + $0x88] sm:$0xff]
    %v659 = vld [vmem:[%s9 + $0x90] sm:$0xff]
    %v660 = vld [vmem:[%s9 + $0x98] sm:$0xff]
    %v661 = vld [vmem:[%s9 + $0xa0] sm:$0xff]
    %v662 = vld [vmem:[%s9 + $0xa8] sm:$0xff]
    %v663 = vld [vmem:[%s9 + $0xb0] sm:$0xff]
    %v664 = vld [vmem:[%s9 + $0xb8] sm:$0xff]
    %v665 = vld [vmem:[%s9 + $0xc0] sm:$0xff]
    %v666 = vld [vmem:[%s9 + $0xc8] sm:$0xff]
    %v667 = vld [vmem:[%s9 + $0xd0] sm:$0xff]
    %v668 = vld [vmem:[%s9 + $0xd8] sm:$0xff]
    %v669 = vld [vmem:[%s9 + $0xe0] sm:$0xff]
    %v670 = vld [vmem:[%s9 + $0xe8] sm:$0xff]
    %v671 = vld [vmem:[%s9 + $0xf0] sm:$0xff]
    %v672 = vld [vmem:[%s9 + $0xf8] sm:$0xff]
    %v705 = vunpack.c.l.b16 %v641
    %v706 = vunpack.c.h.b16 %v641
    %v707 = vunpack.c.l.b16 %v642
    %v708 = vunpack.c.h.b16 %v642
    %v709 = vunpack.c.l.b16 %v643
    %v710 = vunpack.c.h.b16 %v643
    %v711 = vunpack.c.l.b16 %v644
    %v712 = vunpack.c.h.b16 %v644
    %v713 = vunpack.c.l.b16 %v645
    %v714 = vunpack.c.h.b16 %v645
    %v715 = vunpack.c.l.b16 %v646
    %v716 = vunpack.c.h.b16 %v646
    %v717 = vunpack.c.l.b16 %v647
    %v718 = vunpack.c.h.b16 %v647
    %v719 = vunpack.c.l.b16 %v648
    %v720 = vunpack.c.h.b16 %v648
    %v721 = vunpack.c.l.b16 %v649
    %v722 = vunpack.c.h.b16 %v649
    %v723 = vunpack.c.l.b16 %v650
    %v724 = vunpack.c.h.b16 %v650
    %v725 = vunpack.c.l.b16 %v651
    %v726 = vunpack.c.h.b16 %v651
    %v727 = vunpack.c.l.b16 %v652
    %v728 = vunpack.c.h.b16 %v652
    %v729 = vunpack.c.l.b16 %v653
    %v730 = vunpack.c.h.b16 %v653
    %v731 = vunpack.c.l.b16 %v654
    %v732 = vunpack.c.h.b16 %v654
    %v733 = vunpack.c.l.b16 %v655
    %v734 = vunpack.c.h.b16 %v655
    %v735 = vunpack.c.l.b16 %v656
    %v736 = vunpack.c.h.b16 %v656
    %v737 = vunpack.c.l.b16 %v657
    %v738 = vunpack.c.h.b16 %v657
    %v739 = vunpack.c.l.b16 %v658
    %v740 = vunpack.c.h.b16 %v658
    %v741 = vunpack.c.l.b16 %v659
    %v742 = vunpack.c.h.b16 %v659
    %v743 = vunpack.c.l.b16 %v660
    %v744 = vunpack.c.h.b16 %v660
    %v745 = vunpack.c.l.b16 %v661
    %v746 = vunpack.c.h.b16 %v661
    %v747 = vunpack.c.l.b16 %v662
    %v748 = vunpack.c.h.b16 %v662
    %v749 = vunpack.c.l.b16 %v663
    %v750 = vunpack.c.h.b16 %v663
    %v751 = vunpack.c.l.b16 %v664
    %v752 = vunpack.c.h.b16 %v664
    %v753 = vunpack.c.l.b16 %v665
    %v754 = vunpack.c.h.b16 %v665
    %v755 = vunpack.c.l.b16 %v666
    %v756 = vunpack.c.h.b16 %v666
    %v757 = vunpack.c.l.b16 %v667
    %v758 = vunpack.c.h.b16 %v667
    %v759 = vunpack.c.l.b16 %v668
    %v760 = vunpack.c.h.b16 %v668
    %v761 = vunpack.c.l.b16 %v669
    %v762 = vunpack.c.h.b16 %v669
    %v763 = vunpack.c.l.b16 %v670
    %v764 = vunpack.c.h.b16 %v670
    %v765 = vunpack.c.l.b16 %v671
    %v766 = vunpack.c.h.b16 %v671
    %v767 = vunpack.c.l.b16 %v672
    %v768 = vunpack.c.h.b16 %v672
    %v769 = vpack.c.b16 %v709, %v705
    %v770 = vpack.c.b16 %v710, %v706
    %v771 = vpack.c.b16 %v711, %v707
    %v772 = vpack.c.b16 %v712, %v708
    %v773 = vpack.c.b16 %v717, %v713
    %v774 = vpack.c.b16 %v718, %v714
    %v775 = vpack.c.b16 %v719, %v715
    %v776 = vpack.c.b16 %v720, %v716
    %v777 = vpack.c.b16 %v725, %v721
    %v778 = vpack.c.b16 %v726, %v722
    %v779 = vpack.c.b16 %v727, %v723
    %v780 = vpack.c.b16 %v728, %v724
    %v781 = vpack.c.b16 %v733, %v729
    %v782 = vpack.c.b16 %v734, %v730
    %v783 = vpack.c.b16 %v735, %v731
    %v784 = vpack.c.b16 %v736, %v732
    %v785 = vpack.c.b16 %v741, %v737
    %v786 = vpack.c.b16 %v742, %v738
    %v787 = vpack.c.b16 %v743, %v739
    %v788 = vpack.c.b16 %v744, %v740
    %v789 = vpack.c.b16 %v749, %v745
    %v790 = vpack.c.b16 %v750, %v746
    %v791 = vpack.c.b16 %v751, %v747
    %v792 = vpack.c.b16 %v752, %v748
    %v793 = vpack.c.b16 %v757, %v753
    %v794 = vpack.c.b16 %v758, %v754
    %v795 = vpack.c.b16 %v759, %v755
    %v796 = vpack.c.b16 %v760, %v756
    %v797 = vpack.c.b16 %v765, %v761
    %v798 = vpack.c.b16 %v766, %v762
    %v799 = vpack.c.b16 %v767, %v763
    %v800 = vpack.c.b16 %v768, %v764
    %833 = vmatprep.subr.bf16.mxu0 %v770
    %834 = vmatpush1.bf16.msra.mxu0 %v769
    %835 = vmatprep.subr.bf16.mxu0 %v774
    %836 = vmatpush1.bf16.msra.mxu0 %v773
    %837 = vmatprep.subr.bf16.mxu0 %v778
    %838 = vmatpush1.bf16.msra.mxu0 %v777
    %839 = vmatprep.subr.bf16.mxu0 %v782
    %840 = vmatpush1.bf16.msra.mxu0 %v781
    %841 = vmatprep.subr.bf16.mxu0 %v786
    %842 = vmatpush1.bf16.msra.mxu0 %v785
    %843 = vmatprep.subr.bf16.mxu0 %v790
    %844 = vmatpush1.bf16.msra.mxu0 %v789
    %845 = vmatprep.subr.bf16.mxu0 %v794
    %846 = vmatpush1.bf16.msra.mxu0 %v793
    %847 = vmatprep.subr.bf16.mxu0 %v798
    %848 = vmatpush1.bf16.msra.mxu0 %v797
    %849 = vmatprep.subr.bf16.mxu0 0
    %850 = vmatpush1.bf16.msra.mxu0 0
    %851 = vmatprep.subr.bf16.mxu0 0
    %852 = vmatpush1.bf16.msra.mxu0 0
    %853 = vmatprep.subr.bf16.mxu0 0
    %854 = vmatpush1.bf16.msra.mxu0 0
    %855 = vmatprep.subr.bf16.mxu0 0
    %856 = vmatpush1.bf16.msra.mxu0 0
    %857 = vmatprep.subr.bf16.mxu0 0
    %858 = vmatpush1.bf16.msra.mxu0 0
    %859 = vmatprep.subr.bf16.mxu0 0
    %860 = vmatpush1.bf16.msra.mxu0 0
    %861 = vmatprep.subr.bf16.mxu0 0
    %862 = vmatpush1.bf16.msra.mxu0 0
    %863 = vmatprep.subr.bf16.mxu0 0
    %864 = vmatpush1.bf16.msra.mxu0 0
    %865 = vmatprep.mubr.bf16.mxu0 0
    %866 = vmatmul.mubr.bf16.gmra.mrb[0].mxu0 %v640
    %v867 = vpop.f32.mrb[0].mxu0
    %v868 = vadd.f32 0.0, %v867
    %v869 = vpop.f32.mrb[0].mxu0
    %v870 = vadd.f32 0.0, %v869
    %v871 = vpop.f32.mrb[0].mxu0
    %v872 = vpop.f32.mrb[0].mxu0
    %873 = vdwg.mxu0
    %874 = vmatprep.subr.bf16.mxu0 %v772
    %875 = vmatpush1.bf16.msra.mxu0 %v771
    %876 = vmatprep.subr.bf16.mxu0 %v776
    %877 = vmatpush1.bf16.msra.mxu0 %v775
    %878 = vmatprep.subr.bf16.mxu0 %v780
    %879 = vmatpush1.bf16.msra.mxu0 %v779
    %880 = vmatprep.subr.bf16.mxu0 %v784
    %881 = vmatpush1.bf16.msra.mxu0 %v783
    %882 = vmatprep.subr.bf16.mxu0 %v788
    %883 = vmatpush1.bf16.msra.mxu0 %v787
    %884 = vmatprep.subr.bf16.mxu0 %v792
    %885 = vmatpush1.bf16.msra.mxu0 %v791
    %886 = vmatprep.subr.bf16.mxu0 %v796
    %887 = vmatpush1.bf16.msra.mxu0 %v795
    %888 = vmatprep.subr.bf16.mxu0 %v800
    %889 = vmatpush1.bf16.msra.mxu0 %v799
    %890 = vmatprep.subr.bf16.mxu0 0
    %891 = vmatpush1.bf16.msra.mxu0 0
    %892 = vmatprep.subr.bf16.mxu0 0
    %893 = vmatpush1.bf16.msra.mxu0 0
    %894 = vmatprep.subr.bf16.mxu0 0
    %895 = vmatpush1.bf16.msra.mxu0 0
    %896 = vmatprep.subr.bf16.mxu0 0
    %897 = vmatpush1.bf16.msra.mxu0 0
    %898 = vmatprep.subr.bf16.mxu0 0
    %899 = vmatpush1.bf16.msra.mxu0 0
    %900 = vmatprep.subr.bf16.mxu0 0
    %901 = vmatpush1.bf16.msra.mxu0 0
    %902 = vmatprep.subr.bf16.mxu0 0
    %903 = vmatpush1.bf16.msra.mxu0 0
    %904 = vmatprep.subr.bf16.mxu0 0
    %905 = vmatpush1.bf16.msra.mxu0 0
    %906 = vmatprep.mubr.bf16.mxu0 0
    %907 = vmatmul.mubr.bf16.gmra.mrb[0].mxu0 %v640
    %v908 = vpop.f32.mrb[0].mxu0
    %v909 = vadd.f32 0.0, %v908
    %v910 = vpop.f32.mrb[0].mxu0
    %v911 = vadd.f32 0.0, %v910
    %v912 = vpop.f32.mrb[0].mxu0
    %v913 = vpop.f32.mrb[0].mxu0
    %914 = vdwg.mxu0
    %v947 = vunpack.c.l.b16 %v608
    %v948 = vunpack.c.h.b16 %v608
    %v949 = vunpack.c.l.b16 %v609
    %v950 = vunpack.c.h.b16 %v609
    %v951 = vunpack.c.l.b16 %v610
    %v952 = vunpack.c.h.b16 %v610
    %v953 = vunpack.c.l.b16 %v611
    %v954 = vunpack.c.h.b16 %v611
    %v955 = vunpack.c.l.b16 %v612
    %v956 = vunpack.c.h.b16 %v612
    %v957 = vunpack.c.l.b16 %v613
    %v958 = vunpack.c.h.b16 %v613
    %v959 = vunpack.c.l.b16 %v614
    %v960 = vunpack.c.h.b16 %v614
    %v961 = vunpack.c.l.b16 %v615
    %v962 = vunpack.c.h.b16 %v615
    %v963 = vunpack.c.l.b16 %v616
    %v964 = vunpack.c.h.b16 %v616
    %v965 = vunpack.c.l.b16 %v617
    %v966 = vunpack.c.h.b16 %v617
    %v967 = vunpack.c.l.b16 %v618
    %v968 = vunpack.c.h.b16 %v618
    %v969 = vunpack.c.l.b16 %v619
    %v970 = vunpack.c.h.b16 %v619
    %v971 = vunpack.c.l.b16 %v620
    %v972 = vunpack.c.h.b16 %v620
    %v973 = vunpack.c.l.b16 %v621
    %v974 = vunpack.c.h.b16 %v621
    %v975 = vunpack.c.l.b16 %v622
    %v976 = vunpack.c.h.b16 %v622
    %v977 = vunpack.c.l.b16 %v623
    %v978 = vunpack.c.h.b16 %v623
    %v979 = vunpack.c.l.b16 %v624
    %v980 = vunpack.c.h.b16 %v624
    %v981 = vunpack.c.l.b16 %v625
    %v982 = vunpack.c.h.b16 %v625
    %v983 = vunpack.c.l.b16 %v626
    %v984 = vunpack.c.h.b16 %v626
    %v985 = vunpack.c.l.b16 %v627
    %v986 = vunpack.c.h.b16 %v627
    %v987 = vunpack.c.l.b16 %v628
    %v988 = vunpack.c.h.b16 %v628
    %v989 = vunpack.c.l.b16 %v629
    %v990 = vunpack.c.h.b16 %v629
    %v991 = vunpack.c.l.b16 %v630
    %v992 = vunpack.c.h.b16 %v630
    %v993 = vunpack.c.l.b16 %v631
    %v994 = vunpack.c.h.b16 %v631
    %v995 = vunpack.c.l.b16 %v632
    %v996 = vunpack.c.h.b16 %v632
    %v997 = vunpack.c.l.b16 %v633
    %v998 = vunpack.c.h.b16 %v633
    %v999 = vunpack.c.l.b16 %v634
    %v1000 = vunpack.c.h.b16 %v634
    %v1001 = vunpack.c.l.b16 %v635
    %v1002 = vunpack.c.h.b16 %v635
    %v1003 = vunpack.c.l.b16 %v636
    %v1004 = vunpack.c.h.b16 %v636
    %v1005 = vunpack.c.l.b16 %v637
    %v1006 = vunpack.c.h.b16 %v637
    %v1007 = vunpack.c.l.b16 %v638
    %v1008 = vunpack.c.h.b16 %v638
    %v1009 = vunpack.c.l.b16 %v639
    %v1010 = vunpack.c.h.b16 %v639
    %v1011 = vpack.c.b16 %v951, %v947
    %v1012 = vpack.c.b16 %v952, %v948
    %v1013 = vpack.c.b16 %v953, %v949
    %v1014 = vpack.c.b16 %v954, %v950
    %v1015 = vpack.c.b16 %v959, %v955
    %v1016 = vpack.c.b16 %v960, %v956
    %v1017 = vpack.c.b16 %v961, %v957
    %v1018 = vpack.c.b16 %v962, %v958
    %v1019 = vpack.c.b16 %v967, %v963
    %v1020 = vpack.c.b16 %v968, %v964
    %v1021 = vpack.c.b16 %v969, %v965
    %v1022 = vpack.c.b16 %v970, %v966
    %v1023 = vpack.c.b16 %v975, %v971
    %v1024 = vpack.c.b16 %v976, %v972
    %v1025 = vpack.c.b16 %v977, %v973
    %v1026 = vpack.c.b16 %v978, %v974
    %v1027 = vpack.c.b16 %v983, %v979
    %v1028 = vpack.c.b16 %v984, %v980
    %v1029 = vpack.c.b16 %v985, %v981
    %v1030 = vpack.c.b16 %v986, %v982
    %v1031 = vpack.c.b16 %v991, %v987
    %v1032 = vpack.c.b16 %v992, %v988
    %v1033 = vpack.c.b16 %v993, %v989
    %v1034 = vpack.c.b16 %v994, %v990
    %v1035 = vpack.c.b16 %v999, %v995
    %v1036 = vpack.c.b16 %v1000, %v996
    %v1037 = vpack.c.b16 %v1001, %v997
    %v1038 = vpack.c.b16 %v1002, %v998
    %v1039 = vpack.c.b16 %v1007, %v1003
    %v1040 = vpack.c.b16 %v1008, %v1004
    %v1041 = vpack.c.b16 %v1009, %v1005
    %v1042 = vpack.c.b16 %v1010, %v1006
    %1075 = vmatprep.subr.bf16.mxu0 %v1012
    %1076 = vmatpush1.bf16.msra.mxu0 %v1011
    %1077 = vmatprep.subr.bf16.mxu0 %v1016
    %1078 = vmatpush1.bf16.msra.mxu0 %v1015
    %1079 = vmatprep.subr.bf16.mxu0 %v1020
    %1080 = vmatpush1.bf16.msra.mxu0 %v1019
    %1081 = vmatprep.subr.bf16.mxu0 %v1024
    %1082 = vmatpush1.bf16.msra.mxu0 %v1023
    %1083 = vmatprep.subr.bf16.mxu0 %v1028
    %1084 = vmatpush1.bf16.msra.mxu0 %v1027
    %1085 = vmatprep.subr.bf16.mxu0 %v1032
    %1086 = vmatpush1.bf16.msra.mxu0 %v1031
    %1087 = vmatprep.subr.bf16.mxu0 %v1036
    %1088 = vmatpush1.bf16.msra.mxu0 %v1035
    %1089 = vmatprep.subr.bf16.mxu0 %v1040
    %1090 = vmatpush1.bf16.msra.mxu0 %v1039
    %1091 = vmatprep.subr.bf16.mxu0 0
    %1092 = vmatpush1.bf16.msra.mxu0 0
    %1093 = vmatprep.subr.bf16.mxu0 0
    %1094 = vmatpush1.bf16.msra.mxu0 0
    %1095 = vmatprep.subr.bf16.mxu0 0
    %1096 = vmatpush1.bf16.msra.mxu0 0
    %1097 = vmatprep.subr.bf16.mxu0 0
    %1098 = vmatpush1.bf16.msra.mxu0 0
    %1099 = vmatprep.subr.bf16.mxu0 0
    %1100 = vmatpush1.bf16.msra.mxu0 0
    %1101 = vmatprep.subr.bf16.mxu0 0
    %1102 = vmatpush1.bf16.msra.mxu0 0
    %1103 = vmatprep.subr.bf16.mxu0 0
    %1104 = vmatpush1.bf16.msra.mxu0 0
    %1105 = vmatprep.subr.bf16.mxu0 0
    %1106 = vmatpush1.bf16.msra.mxu0 0
    %1107 = vmatprep.mubr.bf16.mxu0 0
    %1108 = vmatmul.mubr.bf16.gmra.mrb[0].mxu0 %v607
    %v1109 = vpop.f32.mrb[0].mxu0
    %v1110 = vadd.f32 %v868, %v1109
    %v1111 = vpop.f32.mrb[0].mxu0
    %v1112 = vadd.f32 %v870, %v1111
    %v1113 = vpop.f32.mrb[0].mxu0
    %v1114 = vpop.f32.mrb[0].mxu0
    %1115 = vdwg.mxu0
    %1116 = vmatprep.subr.bf16.mxu0 %v1014
    %1117 = vmatpush1.bf16.msra.mxu0 %v1013
    %1118 = vmatprep.subr.bf16.mxu0 %v1018
    %1119 = vmatpush1.bf16.msra.mxu0 %v1017
    %1120 = vmatprep.subr.bf16.mxu0 %v1022
    %1121 = vmatpush1.bf16.msra.mxu0 %v1021
    %1122 = vmatprep.subr.bf16.mxu0 %v1026
    %1123 = vmatpush1.bf16.msra.mxu0 %v1025
    %1124 = vmatprep.subr.bf16.mxu0 %v1030
    %1125 = vmatpush1.bf16.msra.mxu0 %v1029
    %1126 = vmatprep.subr.bf16.mxu0 %v1034
    %1127 = vmatpush1.bf16.msra.mxu0 %v1033
    %1128 = vmatprep.subr.bf16.mxu0 %v1038
    %1129 = vmatpush1.bf16.msra.mxu0 %v1037
    %1130 = vmatprep.subr.bf16.mxu0 %v1042
    %1131 = vmatpush1.bf16.msra.mxu0 %v1041
    %1132 = vmatprep.subr.bf16.mxu0 0
    %1133 = vmatpush1.bf16.msra.mxu0 0
    %1134 = vmatprep.subr.bf16.mxu0 0
    %1135 = vmatpush1.bf16.msra.mxu0 0
    %1136 = vmatprep.subr.bf16.mxu0 0
    %1137 = vmatpush1.bf16.msra.mxu0 0
    %1138 = vmatprep.subr.bf16.mxu0 0
    %1139 = vmatpush1.bf16.msra.mxu0 0
    %1140 = vmatprep.subr.bf16.mxu0 0
    %1141 = vmatpush1.bf16.msra.mxu0 0
    %1142 = vmatprep.subr.bf16.mxu0 0
    %1143 = vmatpush1.bf16.msra.mxu0 0
    %1144 = vmatprep.subr.bf16.mxu0 0
    %1145 = vmatpush1.bf16.msra.mxu0 0
    %1146 = vmatprep.subr.bf16.mxu0 0
    %1147 = vmatpush1.bf16.msra.mxu0 0
    %1148 = vmatprep.mubr.bf16.mxu0 0
    %1149 = vmatmul.mubr.bf16.gmra.mrb[0].mxu0 %v607
    %v1150 = vpop.f32.mrb[0].mxu0
    %v1151 = vadd.f32 %v909, %v1150
    %v1152 = vpop.f32.mrb[0].mxu0
    %v1153 = vadd.f32 %v911, %v1152
    %v1154 = vpop.f32.mrb[0].mxu0
    %v1155 = vpop.f32.mrb[0].mxu0
    %1156 = vdwg.mxu0
    %v1157 = vld [vmem:[%s10] sm:$0xf]
    %v1159 = vlaneseq
    %v1160 = vshrl.u32 %v1159, 7
    %v1161 = vsub.s32 0, %v1160
    %v1162 = vrot.slane %v1157, %v1161
    %v1163 = vlaneseq
    %v1164 = vshrl.u32 %v1163, 7
    %v1165 = vsub.s32 1, %v1164
    %v1166 = vrot.slane %v1157, %v1165
    %v1167 = vlaneseq
    %v1168 = vshrl.u32 %v1167, 7
    %v1169 = vsub.s32 2, %v1168
    %v1170 = vrot.slane %v1157, %v1169
    %v1171 = vlaneseq
    %v1172 = vshrl.u32 %v1171, 7
    %v1173 = vsub.s32 3, %v1172
    %v1174 = vrot.slane %v1157, %v1173
    %v1179 = vadd.f32 %v1110, %v1162
    %v1180 = vadd.f32 %v1112, %v1166
    %v1181 = vadd.f32 %v1151, %v1170
    %v1182 = vadd.f32 %v1153, %v1174
    %v1183 = vadd.f32 %v1179, %v40
    %v1184 = vadd.f32 %v1180, %v41
    %v1185 = vadd.f32 %v1181, %v42
    %v1186 = vadd.f32 %v1182, %v43
    %1187 = vst [vmem:[#allocation2] sm:$0xff] %v1183
    %1188 = vst [vmem:[#allocation2 + $0x8] sm:$0xff] %v1184
    %1189 = vst [vmem:[#allocation2 + $0x10] sm:$0xff] %v1185
    %1190 = vst.msk [vmem:[#allocation2 + $0x18] sm:$0xff] %vm522, %v1186
    // Predicated region
    $region46: #{adaptnet_forward.1} parent=1 // pred_check
      _
    $region47: #{adaptnet_forward.1} parent=1 // pred_check_branch
      %1192 = sbr.rel (0) target = $region49
    $region48: #{adaptnet_forward.1} parent=1 // pred_region
      %s1194 = ssub.s32 512, 512
      %1195 = vsyncadd [#allocation3], %s1194
      %s1197 = sshll.u32 [#allocation2], 4
      %s1198 = int_to_ptr.vmem [resolvable:$true] %s1197
      %1200 = dma.vmem_to_hbm [thread:$0]  %s1198, 512, %s11, [#allocation3]
    $region49: #{adaptnet_forward.1} parent=1 // pred_fallthru
      _
    // Predicated region
    $region50: #{adaptnet_forward.1} parent=1 // pred_check
      _
    $region51: #{adaptnet_forward.1} parent=1 // pred_check_branch
      %1202 = sbr.rel (0) target = $region53
    $region52: #{adaptnet_forward.1} parent=1 // pred_region
      %1203 = dma.done [#allocation3], 512
    $region53: #{adaptnet_forward.1} parent=1 // pred_fallthru
      _
    %1204 = vsyncpa [#allocation3], 1

</llo_original>
